<compile_context>
chip_gen: v7x
topology: tpu7x:2x2x1
jax: 0.10.0
libtpu: 0.0.40
codegen_flags: <defaults>
</compile_context>

<pallas_src>
import functools

import jax
import jax.numpy as jnp
import numpy as np
from jax.experimental import pallas as pl
from jax.experimental.pallas import tpu as pltpu


def _bert_emb_kernel(tok_ids_smem,            # scalar-prefetch: (B, L) int32 in SMEM
                     seg_ids_ref,             # (T, 1) int32 block
                     tok_hbm,                 # (V, H) token table, raw HBM ref (pl.ANY)
                     pos_ref,                 # (T, H) position rows (dense block)
                     seg_tbl_ref,             # (3, H) segment table (VMEM resident)
                     scale_ref, bias_ref,     # (1, H) LayerNorm params (VMEM resident)
                     out_ref,                 # (T, H) output block (batch dim squeezed)
                     tok_buf,                 # VMEM scratch (T, H): gathered token rows
                     sems,                    # (T,) DMA semaphores
                     *, block_t, hidden, eps):
    b = pl.program_id(0)
    lb = pl.program_id(1)
    base = lb * block_t

    # 1) Kick off all T token-row gathers (HBM -> VMEM). They stay in flight while
    #    the position + segment contribution is computed below.
    @pl.loop(0, block_t)
    def _issue(r):
        tid = tok_ids_smem[b, base + r]
        pltpu.make_async_copy(tok_hbm.at[pl.ds(tid, 1), :],
                              tok_buf.at[pl.ds(r, 1), :],
                              sems.at[r]).start()

    # 2) Segment embedding: cheap in-VMEM select over the 3 resident rows.
    seg_col = seg_ids_ref[...]                            # (T, 1) int32
    tbl = seg_tbl_ref[...].astype(jnp.float32)            # (3, H)
    seg_emb = jnp.where(seg_col == 1, tbl[1:2],
                        jnp.where(seg_col == 2, tbl[2:3], tbl[0:1]))   # (T, H)

    partial = pos_ref[...].astype(jnp.float32) + seg_emb  # (T, H)

    # 3) Wait for the gathered token rows, then add them in.
    @pl.loop(0, block_t)
    def _wait(r):
        pltpu.make_async_copy(tok_hbm.at[pl.ds(0, 1), :],
                              tok_buf.at[pl.ds(r, 1), :],
                              sems.at[r]).wait()

    x = tok_buf[...].astype(jnp.float32) + partial        # (T, H)

    # 4) LayerNorm, torch-style: unbiased (N-1) std, scale*(x-mean)/(std+eps)+bias.
    mean = jnp.mean(x, axis=-1, keepdims=True)
    d = x - mean
    var_unbiased = jnp.sum(d * d, axis=-1, keepdims=True) * (1.0 / (hidden - 1))
    std = jnp.sqrt(var_unbiased)
    inv = pl.reciprocal(std + eps, approx=True)           # EUP slot; frees the VALU
    out_ref[...] = (scale_ref[...] * (d * inv) + bias_ref[...]).astype(out_ref.dtype)


def _pick_block_tokens(seq_len):
    """Choose T (tokens per grid step): whole sequence for short L, else 128-512."""
    if seq_len <= 256:
        return seq_len
    for t in (512, 384, 256, 128):
        if seq_len % t == 0:
            return t
    return seq_len


def bert_embedding_forward(sentence, segment_label,
                           tok_table, pos_table, seg_table,
                           ln_scale, ln_bias, eps=1e-6, block_tokens=None):
    B, L = sentence.shape
    V, H = tok_table.shape
    T = block_tokens if block_tokens is not None else _pick_block_tokens(L)
    assert L % T == 0, "block_tokens must divide the sequence length"

    tok_ids = sentence.astype(jnp.int32)                          # (B, L) scalar prefetch
    seg_ids = segment_label.astype(jnp.int32).reshape(B, L, 1)    # T lands on sublanes
    scale2d = ln_scale.reshape(1, H).astype(jnp.float32)
    bias2d = ln_bias.reshape(1, H).astype(jnp.float32)

    kernel = functools.partial(_bert_emb_kernel, block_t=T, hidden=H, eps=eps)

    grid_spec = pltpu.PrefetchScalarGridSpec(
        num_scalar_prefetch=1,
        grid=(B, L // T),
        in_specs=[
            # segment ids for this (batch, token-block): kernel sees (T, 1)
            pl.BlockSpec((None, T, 1), lambda b, l, tok: (b, l, 0)),
            # token table stays in HBM; rows gathered by manual DMA inside the kernel
            pl.BlockSpec(memory_space=pl.ANY),
            # position rows for this block: contiguous dense (T, H) load
            pl.BlockSpec((T, H), lambda b, l, tok: (l, 0)),
            # tiny segment table + LayerNorm params: fully resident (constant block)
            pl.BlockSpec((3, H), lambda b, l, tok: (0, 0)),
            pl.BlockSpec((1, H), lambda b, l, tok: (0, 0)),
            pl.BlockSpec((1, H), lambda b, l, tok: (0, 0)),
        ],
        out_specs=pl.BlockSpec((None, T, H), lambda b, l, tok: (b, l, 0)),
        scratch_shapes=[
            pltpu.VMEM((T, H), tok_table.dtype),     # gathered token rows
            pltpu.SemaphoreType.DMA((T,)),           # one sem per in-flight row copy
        ],
    )

    return pl.pallas_call(
        kernel,
        out_shape=jax.ShapeDtypeStruct((B, L, H), jnp.float32),
        grid_spec=grid_spec,
        compiler_params=pltpu.CompilerParams(
            dimension_semantics=("parallel", "parallel"),
            vmem_limit_bytes=32 * 1024 * 1024),
    )(tok_ids, seg_ids, tok_table, pos_table, seg_table, scale2d, bias2d)


def _reference(sentence, segment_label, tok_table, pos_table, seg_table,
               ln_scale, ln_bias, eps=1e-6):
    B, L = sentence.shape
    x = (tok_table[sentence]
         + pos_table[jnp.arange(L)][None, :, :]
         + seg_table[segment_label])
    mean = jnp.mean(x, axis=-1, keepdims=True)
    d = x - mean
    H = x.shape[-1]
    std = jnp.sqrt(jnp.sum(d * d, axis=-1, keepdims=True) / (H - 1))
    return ln_scale * d / (std + eps) + ln_bias


if __name__ == "__main__":
    # Small, module-consistent shapes.
    B, L, H = 2, 8, 32
    vocab_size, pad_id = 50, 0

    key = jax.random.PRNGKey(0)
    k_tok, k_pos, k_seg, k_sent, k_seglab = jax.random.split(key, 5)

    # nn.Embedding default init ~ N(0, 1); padding_idx rows zeroed.
    tok_table = jax.random.normal(k_tok, (vocab_size, H), dtype=jnp.float32)
    tok_table = tok_table.at[pad_id].set(0.0)                 # padding_idx=pad_id
    pos_table = jax.random.normal(k_pos, (L, H), dtype=jnp.float32)
    seg_table = jax.random.normal(k_seg, (3, H), dtype=jnp.float32)
    seg_table = seg_table.at[0].set(0.0)                      # padding_idx=0

    # LayerNorm params as in __init__: scale=1, bias=0.
    ln_scale = jnp.ones((H,), dtype=jnp.float32)
    ln_bias = jnp.zeros((H,), dtype=jnp.float32)

    sentence = jax.random.randint(k_sent, (B, L), 0, vocab_size, dtype=jnp.int32)
    segment_label = jax.random.randint(k_seglab, (B, L), 0, 3, dtype=jnp.int32)

    out = bert_embedding_forward(sentence, segment_label,
                                 tok_table, pos_table, seg_table,
                                 ln_scale, ln_bias)
    out = jax.block_until_ready(out)

    ref = _reference(sentence, segment_label, tok_table, pos_table, seg_table,
                     ln_scale, ln_bias)
    # Tolerance relaxed slightly because pl.reciprocal(approx=True) is an EUP approximation.
    np.testing.assert_allclose(np.asarray(out), np.asarray(ref), atol=2e-3, rtol=2e-3)

    print("KERNEL_OK")
</pallas_src>

<mosaic_0001>
module attributes {stable_mosaic.version = 11 : i64} {
  func.func @_bert_emb_kernel(%arg0: i32, %arg1: i32, %arg2: memref<2x8xi32, #tpu.memory_space<smem>>, %arg3: memref<1x8x1xi32, #tpu.memory_space<vmem>>, %arg4: memref<50x32xf32, #tpu.memory_space<any>>, %arg5: memref<8x32xf32, #tpu.memory_space<vmem>>, %arg6: memref<3x32xf32, #tpu.memory_space<vmem>>, %arg7: memref<1x32xf32, #tpu.memory_space<vmem>>, %arg8: memref<1x32xf32, #tpu.memory_space<vmem>>, %arg9: memref<1x8x32xf32, #tpu.memory_space<vmem>>, %arg10: memref<8x32xf32, #tpu.memory_space<vmem>>, %arg11: memref<8x!tpu.dma_semaphore, #tpu.memory_space<semaphore_mem>>) attributes {dimension_semantics = [#tpu.dimension_semantics<parallel>, #tpu.dimension_semantics<parallel>], iteration_bounds = array<i64: 2, 1>, scalar_prefetch = 1 : i64, scratch_operands = 2 : i64, tpu.core_type = #tpu.core_type<tc>, window_params = [{transform_indices = @transform_0, window_bounds = array<i64: 1, 8, 1>}, {}, {transform_indices = @transform_2, window_bounds = array<i64: 8, 32>}, {pipeline_mode = #tpu.pipeline_mode<synchronous>, transform_indices = @transform_3, window_bounds = array<i64: 3, 32>}, {pipeline_mode = #tpu.pipeline_mode<synchronous>, transform_indices = @transform_4, window_bounds = array<i64: 1, 32>}, {pipeline_mode = #tpu.pipeline_mode<synchronous>, transform_indices = @transform_5, window_bounds = array<i64: 1, 32>}, {transform_indices = @transform_6, window_bounds = array<i64: 1, 8, 32>}]} {
    %c8_i32 = arith.constant 8 : i32
    %0 = arith.muli %arg1, %c8_i32 : i32
    %c0_i32 = arith.constant 0 : i32
    %c8_i32_0 = arith.constant 8 : i32
    %1 = arith.addi %c0_i32, %c8_i32_0 : i32
    %c1_i32 = arith.constant 1 : i32
    scf.for %arg12 = %c0_i32 to %1 step %c1_i32  : i32 {
      %c1_i32_26 = arith.constant 1 : i32
      %55 = arith.muli %arg12, %c1_i32_26 : i32
      %c0_i32_27 = arith.constant 0 : i32
      %56 = arith.addi %c0_i32_27, %55 : i32
      %57 = arith.addi %0, %56 : i32
      %58 = arith.index_cast %arg0 : i32 to index
      %59 = arith.index_cast %57 : i32 to index
      %60 = memref.load %arg2[%58, %59] : memref<2x8xi32, #tpu.memory_space<smem>>
      %c0_i32_28 = arith.constant 0 : i32
      %61 = tpu.memref_slice %arg4[%60, %c0_i32_28] : memref<50x32xf32, #tpu.memory_space<any>> -> memref<1x32xf32, #tpu.memory_space<any>>
      %c0_i32_29 = arith.constant 0 : i32
      %62 = tpu.memref_slice %arg10[%56, %c0_i32_29] : memref<8x32xf32, #tpu.memory_space<vmem>> -> memref<1x32xf32, #tpu.memory_space<vmem>>
      %63 = tpu.memref_slice %arg11[%56] : memref<8x!tpu.dma_semaphore, #tpu.memory_space<semaphore_mem>> -> memref<1x!tpu.dma_semaphore, #tpu.memory_space<semaphore_mem>>
      %64 = tpu.memref_squeeze %63 : memref<1x!tpu.dma_semaphore, #tpu.memory_space<semaphore_mem>> -> memref<!tpu.dma_semaphore, #tpu.memory_space<semaphore_mem>>
      tpu.enqueue_dma source(%61 : memref<1x32xf32, #tpu.memory_space<any>>) target(%62 : memref<1x32xf32, #tpu.memory_space<vmem>>) target_semaphore(%64 : memref<!tpu.dma_semaphore, #tpu.memory_space<semaphore_mem>>)
    }
    %c8_i32_1 = arith.constant 8 : i32
    %c0 = arith.constant 0 : index
    %c0_2 = arith.constant 0 : index
    %c0_3 = arith.constant 0 : index
    %2 = vector.load %arg3[%c0, %c0_2, %c0_3] : memref<1x8x1xi32, #tpu.memory_space<vmem>>, vector<1x8x1xi32>
    %3 = vector.shape_cast %2 : vector<1x8x1xi32> to vector<8x1xi32>
    %c0_4 = arith.constant 0 : index
    %c0_5 = arith.constant 0 : index
    %4 = vector.load %arg6[%c0_4, %c0_5] : memref<3x32xf32, #tpu.memory_space<vmem>>, vector<3x32xf32>
    %c1_i32_6 = arith.constant 1 : i32
    %5 = vector.broadcast %c1_i32_6 : i32 to vector<8x1xi32>
    %6 = arith.cmpi eq, %3, %5 : vector<8x1xi32>
    %7 = vector.extract_strided_slice %4 {offsets = [1, 0], sizes = [1, 32], strides = [1, 1]} : vector<3x32xf32> to vector<1x32xf32>
    %c2_i32 = arith.constant 2 : i32
    %8 = vector.broadcast %c2_i32 : i32 to vector<8x1xi32>
    %9 = arith.cmpi eq, %3, %8 : vector<8x1xi32>
    %10 = vector.extract_strided_slice %4 {offsets = [2, 0], sizes = [1, 32], strides = [1, 1]} : vector<3x32xf32> to vector<1x32xf32>
    %11 = vector.extract_strided_slice %4 {offsets = [0, 0], sizes = [1, 32], strides = [1, 1]} : vector<3x32xf32> to vector<1x32xf32>
    %12 = vector.shape_cast %9 : vector<8x1xi1> to vector<8x1xi1>
    %13 = vector.broadcast %12 : vector<8x1xi1> to vector<8x32xi1>
    %14 = vector.shape_cast %10 : vector<1x32xf32> to vector<1x32xf32>
    %15 = vector.broadcast %14 : vector<1x32xf32> to vector<8x32xf32>
    %16 = vector.shape_cast %11 : vector<1x32xf32> to vector<1x32xf32>
    %17 = vector.broadcast %16 : vector<1x32xf32> to vector<8x32xf32>
    %18 = arith.select %13, %15, %17 : vector<8x32xi1>, vector<8x32xf32>
    %19 = vector.shape_cast %6 : vector<8x1xi1> to vector<8x1xi1>
    %20 = vector.broadcast %19 : vector<8x1xi1> to vector<8x32xi1>
    %21 = vector.shape_cast %7 : vector<1x32xf32> to vector<1x32xf32>
    %22 = vector.broadcast %21 : vector<1x32xf32> to vector<8x32xf32>
    %23 = arith.select %20, %22, %18 : vector<8x32xi1>, vector<8x32xf32>
    %c0_7 = arith.constant 0 : index
    %c0_8 = arith.constant 0 : index
    %24 = vector.load %arg5[%c0_7, %c0_8] : memref<8x32xf32, #tpu.memory_space<vmem>>, vector<8x32xf32>
    %25 = arith.addf %24, %23 : vector<8x32xf32>
    %c0_i32_9 = arith.constant 0 : i32
    %c8_i32_10 = arith.constant 8 : i32
    %26 = arith.addi %c0_i32_9, %c8_i32_10 : i32
    %c1_i32_11 = arith.constant 1 : i32
    scf.for %arg12 = %c0_i32_9 to %26 step %c1_i32_11  : i32 {
      %c1_i32_26 = arith.constant 1 : i32
      %55 = arith.muli %arg12, %c1_i32_26 : i32
      %c0_i32_27 = arith.constant 0 : i32
      %56 = arith.addi %c0_i32_27, %55 : i32
      %c0_i32_28 = arith.constant 0 : i32
      %c0_i32_29 = arith.constant 0 : i32
      %57 = tpu.memref_slice %arg4[%c0_i32_28, %c0_i32_29] : memref<50x32xf32, #tpu.memory_space<any>> -> memref<1x32xf32, #tpu.memory_space<any>>
      %c0_i32_30 = arith.constant 0 : i32
      %58 = tpu.memref_slice %arg10[%56, %c0_i32_30] : memref<8x32xf32, #tpu.memory_space<vmem>> -> memref<1x32xf32, #tpu.memory_space<vmem>>
      %59 = tpu.memref_slice %arg11[%56] : memref<8x!tpu.dma_semaphore, #tpu.memory_space<semaphore_mem>> -> memref<1x!tpu.dma_semaphore, #tpu.memory_space<semaphore_mem>>
      %60 = tpu.memref_squeeze %59 : memref<1x!tpu.dma_semaphore, #tpu.memory_space<semaphore_mem>> -> memref<!tpu.dma_semaphore, #tpu.memory_space<semaphore_mem>>
      tpu.wait_dma2 semaphore(%60 : memref<!tpu.dma_semaphore, #tpu.memory_space<semaphore_mem>>) src(%57 : memref<1x32xf32, #tpu.memory_space<any>>) dst(%58 : memref<1x32xf32, #tpu.memory_space<vmem>>)
    }
    %c8_i32_12 = arith.constant 8 : i32
    %c0_13 = arith.constant 0 : index
    %c0_14 = arith.constant 0 : index
    %27 = vector.load %arg10[%c0_13, %c0_14] : memref<8x32xf32, #tpu.memory_space<vmem>>, vector<8x32xf32>
    %28 = arith.addf %27, %25 : vector<8x32xf32>
    %cst = arith.constant dense<0.000000e+00> : vector<8xf32>
    %29 = vector.multi_reduction <add>, %28, %cst [1] : vector<8x32xf32> to vector<8xf32>
    %30 = vector.shape_cast %29 : vector<8xf32> to vector<8x1xf32>
    %cst_15 = arith.constant 3.200000e+01 : f32
    %31 = vector.broadcast %cst_15 : f32 to vector<8x1xf32>
    %32 = arith.divf %30, %31 : vector<8x1xf32>
    %33 = vector.broadcast %32 : vector<8x1xf32> to vector<8x32xf32>
    %34 = arith.subf %28, %33 : vector<8x32xf32>
    %35 = arith.mulf %34, %34 : vector<8x32xf32>
    %cst_16 = arith.constant dense<0.000000e+00> : vector<8xf32>
    %36 = vector.multi_reduction <add>, %35, %cst_16 [1] : vector<8x32xf32> to vector<8xf32>
    %37 = vector.shape_cast %36 : vector<8xf32> to vector<8x1xf32>
    %cst_17 = arith.constant 0.0322580636 : f32
    %38 = vector.broadcast %cst_17 : f32 to vector<8x1xf32>
    %39 = arith.mulf %37, %38 : vector<8x1xf32>
    %40 = math.sqrt %39 : vector<8x1xf32>
    %cst_18 = arith.constant 9.99999997E-7 : f32
    %41 = vector.broadcast %cst_18 : f32 to vector<8x1xf32>
    %42 = arith.addf %40, %41 : vector<8x1xf32>
    %43 = tpu.reciprocal %42 {approx = true} : vector<8x1xf32> -> vector<8x1xf32>
    %c0_19 = arith.constant 0 : index
    %c0_20 = arith.constant 0 : index
    %44 = vector.load %arg7[%c0_19, %c0_20] : memref<1x32xf32, #tpu.memory_space<vmem>>, vector<1x32xf32>
    %45 = vector.broadcast %43 : vector<8x1xf32> to vector<8x32xf32>
    %46 = arith.mulf %34, %45 : vector<8x32xf32>
    %47 = vector.broadcast %44 : vector<1x32xf32> to vector<8x32xf32>
    %48 = arith.mulf %47, %46 : vector<8x32xf32>
    %c0_21 = arith.constant 0 : index
    %c0_22 = arith.constant 0 : index
    %49 = vector.load %arg8[%c0_21, %c0_22] : memref<1x32xf32, #tpu.memory_space<vmem>>, vector<1x32xf32>
    %50 = vector.broadcast %49 : vector<1x32xf32> to vector<8x32xf32>
    %51 = arith.addf %48, %50 : vector<8x32xf32>
    %c0_23 = arith.constant 0 : index
    %c0_24 = arith.constant 0 : index
    %c0_25 = arith.constant 0 : index
    %52 = vector.load %arg9[%c0_23, %c0_24, %c0_25] : memref<1x8x32xf32, #tpu.memory_space<vmem>>, vector<1x8x32xf32>
    %53 = vector.shape_cast %52 : vector<1x8x32xf32> to vector<8x32xf32>
    %54 = vector.shape_cast %51 : vector<8x32xf32> to vector<1x8x32xf32>
    tpu.vector_store %arg9[%c0_23, %c0_24, %c0_25], %54 {strides = array<i32>} : memref<1x8x32xf32, #tpu.memory_space<vmem>>, vector<1x8x32xf32>,
    return
  }
  func.func @transform_0(%arg0: i32, %arg1: i32, %arg2: memref<2x8xi32, #tpu.memory_space<smem>>) -> (i32, i32, i32) {
    %c0_i32 = arith.constant 0 : i32
    %c0_i32_0 = arith.constant 0 : i32
    return %arg0, %arg1, %c0_i32 : i32, i32, i32
  }
  func.func @transform_2(%arg0: i32, %arg1: i32, %arg2: memref<2x8xi32, #tpu.memory_space<smem>>) -> (i32, i32) {
    %c0_i32 = arith.constant 0 : i32
    %c0_i32_0 = arith.constant 0 : i32
    return %arg1, %c0_i32 : i32, i32
  }
  func.func @transform_3(%arg0: i32, %arg1: i32, %arg2: memref<2x8xi32, #tpu.memory_space<smem>>) -> (i32, i32) {
    %c0_i32 = arith.constant 0 : i32
    %c0_i32_0 = arith.constant 0 : i32
    %c0_i32_1 = arith.constant 0 : i32
    return %c0_i32, %c0_i32_0 : i32, i32
  }
  func.func @transform_4(%arg0: i32, %arg1: i32, %arg2: memref<2x8xi32, #tpu.memory_space<smem>>) -> (i32, i32) {
    %c0_i32 = arith.constant 0 : i32
    %c0_i32_0 = arith.constant 0 : i32
    %c0_i32_1 = arith.constant 0 : i32
    return %c0_i32, %c0_i32_0 : i32, i32
  }
  func.func @transform_5(%arg0: i32, %arg1: i32, %arg2: memref<2x8xi32, #tpu.memory_space<smem>>) -> (i32, i32) {
    %c0_i32 = arith.constant 0 : i32
    %c0_i32_0 = arith.constant 0 : i32
    %c0_i32_1 = arith.constant 0 : i32
    return %c0_i32, %c0_i32_0 : i32, i32
  }
  func.func @transform_6(%arg0: i32, %arg1: i32, %arg2: memref<2x8xi32, #tpu.memory_space<smem>>) -> (i32, i32, i32) {
    %c0_i32 = arith.constant 0 : i32
    %c0_i32_0 = arith.constant 0 : i32
    return %arg0, %arg1, %c0_i32 : i32, i32, i32
  }
}

</mosaic_0001>

<llo_original>
// kernel: tpu_custom_call.1
$region0: #{tpu_custom_call.1}
  #allocation0 [shape = 'u32[]', space=smem, size = 0x4, offset = 0x4, fixed_abs, tag = 'smem constant byte address 0x4 - core index']
  #allocation1 [shape = 'u32[144,128]{1,0:T(1,128)}', space=vmem, size = 0x12000, scoped, tag = 'internal scratch']
  #allocation2 [shape = 'f32[8,32]{1,0:T(8,128)}', space=vmem, size = 0x1000, scoped, tag = 'scratch operand']
  #allocation3 [shape = 's32[8]{0}', space=sflag, size = 0x20, scoped, tag = 'scratch operand']
  #allocation4 [shape = 's32[1]{0}', space=sflag, size = 0x4, scoped, tag = 'scoped memory for tpu_custom_call.1']
  #allocation5 [shape = 'u8[1024]{0}', space=smem, size = 0x400, scoped, tag = 'prefetched SMEM operand 0']
  #allocation8 [shape = 's32[]', space=sflag, size = 0x4, offset = 0, fixed_abs, tag = 'sflag constant byte address 0x0 - dummy sync flag']
  %s0 = inlined_call_operand.vmem [shape: s32[2,8], index: 0, kind: input, shape index: {}]
  %s1 = inlined_call_operand.vmem [shape: s32[2,8,1], index: 1, kind: input, shape index: {}]
  %s2 = inlined_call_operand.vmem [shape: f32[50,32], index: 2, kind: input, shape index: {}]
  %s3 = inlined_call_operand.vmem [shape: f32[8,32], index: 3, kind: input, shape index: {}]
  %s4 = inlined_call_operand.vmem [shape: f32[3,32], index: 4, kind: input, shape index: {}]
  %s5 = inlined_call_operand.vmem [shape: f32[1,32], index: 5, kind: input, shape index: {}]
  %s6 = inlined_call_operand.vmem [shape: f32[1,32], index: 6, kind: input, shape index: {}]
  %s7 = inlined_call_operand.hbm [shape: f32[2,8,32], index: 7, kind: output, shape index: {}]
  %s8 = sld [smem:[#allocation0]]
  $region97: #{tpu_custom_call.1} parent=0
    _
  %s10 = ssub.s32 1, %s8
  %s11 = scalar_select 0, %s10, %s8
  %s12 = sshll.u32 %s0, 4
  %s13 = int_to_ptr.vmem [resolvable:$true] %s12
  %15 = dma.vmem_to_smem %s13, 32, [#allocation5], [#allocation4]
  %16 = dma.done [#allocation4], 32
  %17 = sfence
  $region1: #{tpu_custom_call.1} parent=0
    #allocation6 [shape = 'u8[8192]{0}', space=vmem, size = 0x2000, scoped, tag = 'output window, operand 0']
    #allocation7 [shape = 's32[2]{0}', space=sflag, size = 0x8, scoped, tag = 'scoped memory for tpu_custom_call.1']
    %18 = vsyncpa [#allocation7], 0
    %s19 = scalar_lea.sflag [#allocation7], 1
    %20 = vsyncpa %s19, 0
    loop: start=0, step=1, limit=4
    $region2: #{tpu_custom_call.1} parent=1 // loop_pre_header
      _
    $region3: #{tpu_custom_call.1} parent=1 // loop_header
      %s22 = sphi 0, %s26
      %p23 = scmp.ge.s32.totalorder %s22, 4
      %s29 = sphi 0, %s41
      %s30 = sphi 0, %s37
      %s31 = sphi 0, %s29
      %s32 = sphi 0, %s30
      %s33 = sphi 0, %s31
      %s34 = sphi 0, %s32
      %s46 = sphi 0, %s48
      %s49 = sphi 0, %s46
      %s50 = sphi 0, %s49
      %s66 = sphi 0, %s50
      %s72 = sphi 0, %s74
      %s75 = sphi 0, %s72
      %s76 = sphi 0, %s75
      %s92 = sphi 0, %s76
      %s96 = sphi 0, %s96
      %s98 = sphi 0, %s96
      %s99 = sphi 0, %s98
      %s113 = sphi 0, %s99
      %s117 = sphi 0, %s117
      %s119 = sphi 0, %s117
      %s120 = sphi 0, %s119
      %s134 = sphi 0, %s120
      %s138 = sphi 0, %s138
      %s140 = sphi 0, %s138
      %s141 = sphi 0, %s140
      %s155 = sphi 0, %s141
      %s163 = sphi 0, %s165
      %s166 = sphi 0, %s163
      %s167 = sphi 0, %s166
      %s183 = sphi 0, %s167
    $region4: #{tpu_custom_call.1} parent=1 // loop_header_branch
      %25 = sbr.rel (%p23) target = $region8
    $region5: #{tpu_custom_call.1} parent=1 // loop_body
      %s27 = ssub.s32 %s22, 1
      %s28 = ssub.s32 %s22, 2
      %s35 = sadd.s32 1, %s30
      %p36 = scmp.ge.s32.totalorder %s35, 1
      %s37 = scalar_select %p36, 0, %s35
      %s38 = sadd.s32 1, %s29
      %s39 = scalar_select %p36, %s38, %s29
      %p40 = scmp.ge.s32.totalorder %s39, 2
      %s41 = scalar_select %p40, 0, %s39
      %s42 = ssub.s32 %s29, %s41
      %s43 = ssub.s32 %s30, %s37
      %s44 = sor.u32 %s42, %s43
      %p45 = scmp.eq.s32.totalorder %s44, 0
      %s47 = sadd.s32 %s46, 1
      %s48 = scalar_select %p45, %s46, %s47
      %p51 = pneg %p45
      %p52 = scmp.eq.s32.totalorder %s22, 1
      %p53 = por %p51, %p52
      %p54 = scmp.ne.s32.totalorder %s46, %s49
      %p55 = scmp.eq.s32.totalorder %s22, 0
      %p56 = por %p54, %p55
      %p57 = scmp.ne.s32.totalorder %s46, %s49
      %p58 = scmp.eq.s32.totalorder %s27, 1
      %p59 = por %p57, %p58
      %p60 = scmp.ne.s32.totalorder %s49, %s50
      %p61 = scmp.eq.s32.totalorder %s27, 0
      %p62 = por %p60, %p61
      %p63 = scmp.ne.s32.totalorder %s49, %s50
      %p64 = scmp.eq.s32.totalorder %s28, 1
      %p65 = por %p63, %p64
      %p67 = scmp.ne.s32.totalorder %s50, %s66
      %p68 = scmp.eq.s32.totalorder %s28, 0
      %p69 = por %p67, %p68
      %s70 = ssub.s32 %s30, %s37
      %p71 = scmp.eq.s32.totalorder %s70, 0
      %s73 = sadd.s32 %s72, 1
      %s74 = scalar_select %p71, %s72, %s73
      %p77 = pneg %p71
      %p78 = scmp.eq.s32.totalorder %s22, 1
      %p79 = por %p77, %p78
      %p80 = scmp.ne.s32.totalorder %s72, %s75
      %p81 = scmp.eq.s32.totalorder %s22, 0
      %p82 = por %p80, %p81
      %p83 = scmp.ne.s32.totalorder %s72, %s75
      %p84 = scmp.eq.s32.totalorder %s27, 1
      %p85 = por %p83, %p84
      %p86 = scmp.ne.s32.totalorder %s75, %s76
      %p87 = scmp.eq.s32.totalorder %s27, 0
      %p88 = por %p86, %p87
      %p89 = scmp.ne.s32.totalorder %s75, %s76
      %p90 = scmp.eq.s32.totalorder %s28, 1
      %p91 = por %p89, %p90
      %p93 = scmp.ne.s32.totalorder %s76, %s92
      %p94 = scmp.eq.s32.totalorder %s28, 0
      %p95 = por %p93, %p94
      %s97 = sadd.s32 %s96, 1
      %p100 = scmp.eq.s32.totalorder %s22, 1
      %p101 = scmp.ne.s32.totalorder %s96, %s98
      %p102 = scmp.eq.s32.totalorder %s22, 0
      %p103 = por %p101, %p102
      %p104 = scmp.ne.s32.totalorder %s96, %s98
      %p105 = scmp.eq.s32.totalorder %s27, 1
      %p106 = por %p104, %p105
      %p107 = scmp.ne.s32.totalorder %s98, %s99
      %p108 = scmp.eq.s32.totalorder %s27, 0
      %p109 = por %p107, %p108
      %p110 = scmp.ne.s32.totalorder %s98, %s99
      %p111 = scmp.eq.s32.totalorder %s28, 1
      %p112 = por %p110, %p111
      %p114 = scmp.ne.s32.totalorder %s99, %s113
      %p115 = scmp.eq.s32.totalorder %s28, 0
      %p116 = por %p114, %p115
      %s118 = sadd.s32 %s117, 1
      %p121 = scmp.eq.s32.totalorder %s22, 1
      %p122 = scmp.ne.s32.totalorder %s117, %s119
      %p123 = scmp.eq.s32.totalorder %s22, 0
      %p124 = por %p122, %p123
      %p125 = scmp.ne.s32.totalorder %s117, %s119
      %p126 = scmp.eq.s32.totalorder %s27, 1
      %p127 = por %p125, %p126
      %p128 = scmp.ne.s32.totalorder %s119, %s120
      %p129 = scmp.eq.s32.totalorder %s27, 0
      %p130 = por %p128, %p129
      %p131 = scmp.ne.s32.totalorder %s119, %s120
      %p132 = scmp.eq.s32.totalorder %s28, 1
      %p133 = por %p131, %p132
      %p135 = scmp.ne.s32.totalorder %s120, %s134
      %p136 = scmp.eq.s32.totalorder %s28, 0
      %p137 = por %p135, %p136
      %s139 = sadd.s32 %s138, 1
      %p142 = scmp.eq.s32.totalorder %s22, 1
      %p143 = scmp.ne.s32.totalorder %s138, %s140
      %p144 = scmp.eq.s32.totalorder %s22, 0
      %p145 = por %p143, %p144
      %p146 = scmp.ne.s32.totalorder %s138, %s140
      %p147 = scmp.eq.s32.totalorder %s27, 1
      %p148 = por %p146, %p147
      %p149 = scmp.ne.s32.totalorder %s140, %s141
      %p150 = scmp.eq.s32.totalorder %s27, 0
      %p151 = por %p149, %p150
      %p152 = scmp.ne.s32.totalorder %s140, %s141
      %p153 = scmp.eq.s32.totalorder %s28, 1
      %p154 = por %p152, %p153
      %p156 = scmp.ne.s32.totalorder %s141, %s155
      %p157 = scmp.eq.s32.totalorder %s28, 0
      %p158 = por %p156, %p157
      %s159 = ssub.s32 %s29, %s41
      %s160 = ssub.s32 %s30, %s37
      %s161 = sor.u32 %s159, %s160
      %p162 = scmp.eq.s32.totalorder %s161, 0
      %s164 = sadd.s32 %s163, 1
      %s165 = scalar_select %p162, %s163, %s164
      %p168 = pneg %p162
      %p169 = scmp.eq.s32.totalorder %s22, 1
      %p170 = por %p168, %p169
      %p171 = scmp.ne.s32.totalorder %s163, %s166
      %p172 = scmp.eq.s32.totalorder %s22, 0
      %p173 = por %p171, %p172
      %p174 = scmp.ne.s32.totalorder %s163, %s166
      %p175 = scmp.eq.s32.totalorder %s27, 1
      %p176 = por %p174, %p175
      %p177 = scmp.ne.s32.totalorder %s166, %s167
      %p178 = scmp.eq.s32.totalorder %s27, 0
      %p179 = por %p177, %p178
      %p180 = scmp.ne.s32.totalorder %s166, %s167
      %p181 = scmp.eq.s32.totalorder %s28, 1
      %p182 = por %p180, %p181
      %p184 = scmp.ne.s32.totalorder %s167, %s183
      %p185 = scmp.eq.s32.totalorder %s28, 0
      %p186 = por %p184, %p185
      %p187 = scmp.le.s32.totalorder 1, %s22
      %p188 = scmp.lt.s32.totalorder %s22, 3
      %p189 = pnand %p187, %p188
      %p190 = pneg %p189
      // Predicated region
      $region9: #{tpu_custom_call.1} parent=5 // pred_check
        _
      $region10: #{tpu_custom_call.1} parent=5 // pred_check_branch
        %192 = sbr.rel (%p189) target = $region12
      $region11: #{tpu_custom_call.1} parent=5 // pred_region
        %s193 = ssub.s32 %s22, 1
        // Predicated region
        $region13: #{tpu_custom_call.1} parent=11 // pred_check
          %p194 = pneg %p88
        $region14: #{tpu_custom_call.1} parent=11 // pred_check_branch
          %196 = sbr.rel (%p194) target = $region16
        $region15: #{tpu_custom_call.1} parent=11 // pred_region
          %p197 = scmp.lt.s32.totalorder %s32, 0
          %s198 = scalar_select %p197, %s32, 0
          %s199 = smul.addr %s198, 8
          %s200 = scalar_lea.vmem %s3, %s199
        $region16: #{tpu_custom_call.1} parent=11 // pred_fallthru
          _
        // Predicated region
        $region17: #{tpu_custom_call.1} parent=11 // pred_check
          %p201 = pneg %p109
        $region18: #{tpu_custom_call.1} parent=11 // pred_check_branch
          %203 = sbr.rel (%p201) target = $region20
        $region19: #{tpu_custom_call.1} parent=11 // pred_region
          _
        $region20: #{tpu_custom_call.1} parent=11 // pred_fallthru
          _
        // Predicated region
        $region21: #{tpu_custom_call.1} parent=11 // pred_check
          %p204 = pneg %p130
        $region22: #{tpu_custom_call.1} parent=11 // pred_check_branch
          %206 = sbr.rel (%p204) target = $region24
        $region23: #{tpu_custom_call.1} parent=11 // pred_region
          _
        $region24: #{tpu_custom_call.1} parent=11 // pred_fallthru
          _
        // Predicated region
        $region25: #{tpu_custom_call.1} parent=11 // pred_check
          %p207 = pneg %p151
        $region26: #{tpu_custom_call.1} parent=11 // pred_check_branch
          %209 = sbr.rel (%p207) target = $region28
        $region27: #{tpu_custom_call.1} parent=11 // pred_region
          _
        $region28: #{tpu_custom_call.1} parent=11 // pred_fallthru
          _
      $region12: #{tpu_custom_call.1} parent=5 // pred_fallthru
        _
      %p210 = scmp.lt.s32.totalorder %s22, 2
      // Predicated region
      $region29: #{tpu_custom_call.1} parent=5 // pred_check
        %p211 = pneg %p210
      $region30: #{tpu_custom_call.1} parent=5 // pred_check_branch
        %213 = sbr.rel (%p211) target = $region32
      $region31: #{tpu_custom_call.1} parent=5 // pred_region
        // Predicated region
        $region33: #{tpu_custom_call.1} parent=31 // pred_check
          %p214 = pneg %p56
        $region34: #{tpu_custom_call.1} parent=31 // pred_check_branch
          %216 = sbr.rel (%p214) target = $region36
        $region35: #{tpu_custom_call.1} parent=31 // pred_region
          %p217 = scmp.lt.s32.totalorder %s29, 1
          %s218 = scalar_select %p217, %s29, 1
          %p219 = scmp.lt.s32.totalorder %s30, 0
          %s220 = scalar_select %p219, %s30, 0
          %s221 = sadd.s32 %s220, %s218
          %s222 = smul.addr %s221, 8
          %s223 = scalar_lea.vmem %s1, %s222
        $region36: #{tpu_custom_call.1} parent=31 // pred_fallthru
          _
      $region32: #{tpu_custom_call.1} parent=5 // pred_fallthru
        _
      %p224 = scmp.le.s32.totalorder 1, %s22
      %p225 = scmp.lt.s32.totalorder %s22, 3
      %p226 = pnand %p224, %p225
      %p227 = pneg %p226
      // Predicated region
      $region37: #{tpu_custom_call.1} parent=5 // pred_check
        _
      $region38: #{tpu_custom_call.1} parent=5 // pred_check_branch
        %229 = sbr.rel (%p226) target = $region40
      $region39: #{tpu_custom_call.1} parent=5 // pred_region
        %s230 = ssub.s32 %s22, 1
        %p231 = scmp.lt.s32.totalorder %s31, 1
        %s232 = scalar_select %p231, %s31, 1
        %p233 = scmp.lt.s32.totalorder %s32, 0
        %s234 = scalar_select %p233, %s32, 0
        %s235 = sadd.s32 %s234, %s232
        %s236 = smul.addr %s235, 8
        %s237 = scalar_lea.vmem %s1, %s236
        %p238 = pneg %p62
        %p239 = pneg %p59
        %p240 = scmp.lt.s32.totalorder %s32, 0
        %s241 = scalar_select %p240, %s32, 0
        %s242 = smul.addr %s241, 8
        %s243 = scalar_lea.vmem %s3, %s242
        %p244 = pneg %p88
        %p245 = pneg %p85
        %p246 = pneg %p109
        %p247 = pneg %p106
        %p248 = pneg %p130
        %p249 = pneg %p127
        %p250 = pneg %p151
        %p251 = pneg %p148
        %p252 = pneg %p179
        %p253 = pneg %p176
        %s254 = sand.u32 %s166, 1
        %s255 = scalar_lea.sflag [#allocation7], %s254
        %s256 = sand.u32 %s166, 1
        %s257 = smul.addr %s256, 8
        %s258 = scalar_lea.vmem [#allocation6], %s257
        %p259 = scmp.lt.s32.totalorder %s31, 1
        %s260 = scalar_select %p259, %s31, 1
        %p261 = scmp.lt.s32.totalorder %s32, 0
        %s262 = scalar_select %p261, %s32, 0
        %s263 = sadd.s32 %s262, %s260
        %s264 = smul.addr %s263, 8
        %s265 = scalar_lea.vmem %s1, %s264
        %p266 = scmp.lt.s32.totalorder %s32, 0
        %s267 = scalar_select %p266, %s32, 0
        %s268 = smul.addr %s267, 8
        %s269 = scalar_lea.vmem %s3, %s268
        %s270 = smul.u32 %s32, 8
        loop: start=0, step=1, limit=8
        $region41: #{tpu_custom_call.1} parent=39 // loop_pre_header
          _
        $region42: #{tpu_custom_call.1} parent=39 // loop_header
          %s272 = sphi 0, %s276
          %p273 = scmp.ge.s32.totalorder %s272, 8
        $region43: #{tpu_custom_call.1} parent=39 // loop_header_branch
          %275 = sbr.rel (%p273) target = $region47
        $region44: #{tpu_custom_call.1} parent=39 // loop_body
          %s277 = sadd.s32 %s270, %s272
          %s278 = sshra.s32 %s277, 7
          %s279 = sand.u32 %s277, 127
          %s280 = sadd.s32 %s278, %s31
          %s281 = smul.u32 %s280, 128
          %s282 = sshra.s32 %s277, 7
          %s283 = sand.u32 %s277, 127
          %s284 = sadd.s32 %s281, %s283
          %s285 = sld [smem:[#allocation5 + %s284]]
          %s286 = scalar_lea.vmem %s2, %s285
          %s287 = scalar_lea.vmem [#allocation2], %s272
          %s288 = scalar_lea.sflag [#allocation3], %s272
          %p290 = scmp.lt.u32.totalorder 1, 8
          %p291 = pneg %p290
          // Predicated region
          $region48: #{tpu_custom_call.1} parent=44 // pred_check
            _
          $region49: #{tpu_custom_call.1} parent=44 // pred_check_branch
            %293 = sbr.rel (%p290) target = $region51
          $region50: #{tpu_custom_call.1} parent=44 // pred_region
            %s308 = sand.u32 1, 7
            %p309 = scmp.eq.s32.totalorder %s308, 0
            %p310 = pneg %p309
            // Predicated region
            $region63: #{tpu_custom_call.1} parent=50 // pred_check
              _
            $region64: #{tpu_custom_call.1} parent=50 // pred_check_branch
              %312 = sbr.rel (%p309) target = $region66
            $region65: #{tpu_custom_call.1} parent=50 // pred_region
              %s313 = sand.u32 1, 7
              %s314 = ssub.s32 1, %s313
              %s315 = scalar_lea.vmem %s286, %s314
              %s316 = ssub.s32 1, %s313
              %s317 = scalar_lea.vmem %s287, %s316 [#allocation2]
              %s318 = sshllo.u32 0, %s313
              loop: start=0, step=1, limit=1
              $region67: #{tpu_custom_call.1} parent=65 // loop_pre_header
                _
              $region68: #{tpu_custom_call.1} parent=65 // loop_header
                %s320 = sphi 0, %s324
                %p321 = scmp.ge.s32.totalorder %s320, 1
                %s325 = sphi %s315, %s315
                %s326 = sphi %s317, %s317
              $region69: #{tpu_custom_call.1} parent=65 // loop_header_branch
                %323 = sbr.rel (%p321) target = $region73
              $region70: #{tpu_custom_call.1} parent=65 // loop_body
                %v327 = vld [vmem:[%s325] sm:%s318]
                %328 = vst [vmem:[%s326] sm:%s318] %v327
              $region71: #{tpu_custom_call.1} parent=65 // loop_footer
                %s324 = sadd.s32 1, %s320
              $region72: #{tpu_custom_call.1} parent=65 // loop_footer_branch
                %319 = sbr.rel target = $region68
              $region73: #{tpu_custom_call.1} parent=65 // loop_exit
                _
            $region66: #{tpu_custom_call.1} parent=50 // pred_fallthru
              _
          $region51: #{tpu_custom_call.1} parent=44 // pred_fallthru
            _
          // Predicated region
          $region52: #{tpu_custom_call.1} parent=44 // pred_check
            %p294 = pneg %p290
          $region53: #{tpu_custom_call.1} parent=44 // pred_check_branch
            %296 = sbr.rel (%p294) target = $region55
          $region54: #{tpu_custom_call.1} parent=44 // pred_region
            %s297 = sshllo.u32 0, 1
            loop: start=0, step=1, limit=1
            $region56: #{tpu_custom_call.1} parent=54 // loop_pre_header
              _
            $region57: #{tpu_custom_call.1} parent=54 // loop_header
              %s299 = sphi 0, %s303
              %p300 = scmp.ge.s32.totalorder %s299, 1
              %s304 = sphi %s286, %s286
              %s305 = sphi %s287, %s287
            $region58: #{tpu_custom_call.1} parent=54 // loop_header_branch
              %302 = sbr.rel (%p300) target = $region62
            $region59: #{tpu_custom_call.1} parent=54 // loop_body
              %v306 = vld [vmem:[%s304] sm:%s297]
              %307 = vst [vmem:[%s305] sm:%s297] %v306
            $region60: #{tpu_custom_call.1} parent=54 // loop_footer
              %s303 = sadd.s32 1, %s299
            $region61: #{tpu_custom_call.1} parent=54 // loop_footer_branch
              %298 = sbr.rel target = $region57
            $region62: #{tpu_custom_call.1} parent=54 // loop_exit
              _
          $region55: #{tpu_custom_call.1} parent=44 // pred_fallthru
            _
          // Predicated region
          $region74: #{tpu_custom_call.1} parent=44 // pred_check
            _
          $region75: #{tpu_custom_call.1} parent=44 // pred_check_branch
            %331 = sbr.rel (0) target = $region77
          $region76: #{tpu_custom_call.1} parent=44 // pred_region
            %332 = vsyncadd %s288, 16
          $region77: #{tpu_custom_call.1} parent=44 // pred_fallthru
            _
        $region45: #{tpu_custom_call.1} parent=39 // loop_footer
          %s276 = sadd.s32 1, %s272
        $region46: #{tpu_custom_call.1} parent=39 // loop_footer_branch
          %271 = sbr.rel target = $region42
        $region47: #{tpu_custom_call.1} parent=39 // loop_exit
          _
        %v333 = vld [vmem:[%s265] sm:$0xff]
        %v334 = vld [vmem:[%s4] sm:$0x7]
        %vm335 = vcmp.eq.s32.totalorder %v333, 1
        %vm336 = vcmp.eq.s32.totalorder %v333, 2
        %v337 = vsel %vm336, 1, 0
        %338 = vset.pattern.permute.xlu0 0
        %339 = vperm.xlu0 %338, %v337
        %v340 = vpop.permute.xlu0 %339
        %vm341 = vcmp.eq.s32.totalorder %v340, 1
        %v342 = vlaneseq
        %v343 = vshrl.u32 %v342, 7
        %v344 = vsub.s32 2, %v343
        %v345 = vrot.slane %v334, %v344
        %v346 = vlaneseq
        %v347 = vshrl.u32 %v346, 7
        %v348 = vsub.s32 0, %v347
        %v349 = vrot.slane %v334, %v348
        %v350 = vsel %vm341, %v345, %v349
        %v351 = vsel %vm335, 1, 0
        %352 = vset.pattern.permute.xlu0 0
        %353 = vperm.xlu0 %352, %v351
        %v354 = vpop.permute.xlu0 %353
        %vm355 = vcmp.eq.s32.totalorder %v354, 1
        %v356 = vlaneseq
        %v357 = vshrl.u32 %v356, 7
        %v358 = vsub.s32 1, %v357
        %v359 = vrot.slane %v334, %v358
        %v360 = vsel %vm355, %v359, %v350
        %v361 = vld [vmem:[%s269] sm:$0xff]
        %v362 = vadd.f32 %v361, %v360
        loop: start=0, step=1, limit=8
        $region78: #{tpu_custom_call.1} parent=39 // loop_pre_header
          _
        $region79: #{tpu_custom_call.1} parent=39 // loop_header
          %s364 = sphi 0, %s368
          %p365 = scmp.ge.s32.totalorder %s364, 8
        $region80: #{tpu_custom_call.1} parent=39 // loop_header_branch
          %367 = sbr.rel (%p365) target = $region84
        $region81: #{tpu_custom_call.1} parent=39 // loop_body
          %s369 = scalar_lea.sflag [#allocation3], %s364
          %s370 = smul.u32 1, 1
          %s371 = sshll.u32 %s370, 4
          %372 = dma.done %s369, %s371
        $region82: #{tpu_custom_call.1} parent=39 // loop_footer
          %s368 = sadd.s32 1, %s364
        $region83: #{tpu_custom_call.1} parent=39 // loop_footer_branch
          %363 = sbr.rel target = $region79
        $region84: #{tpu_custom_call.1} parent=39 // loop_exit
          _
        %v373 = vld [vmem:[#allocation2] sm:$0xff]
        %v374 = vadd.f32 %v373, %v362
        %vm375 = vcmask 261120
        %v376 = vsel %vm375, %v374, 0.0
        %377 = vadd.xlane.f32.xlu0 %v376
        %v378 = vpop.xlane.xlu0 %377
        %v379 = vrcp.pop 32.0
        %v380 = vmul.f32 %v378, %v379
        %v381 = vsub.f32 %v374, %v380
        %v382 = vmul.f32 %v381, %v381
        %v383 = vsel %vm375, %v382, 0.0
        %384 = vadd.xlane.f32.xlu0 %v383
        %v385 = vpop.xlane.xlu0 %384
        %v386 = vmul.f32 %v385, 0.032258064
        %v387 = vrsqrt.pop %v386
        %v388 = vmul.f32 %v386, %v387
        %vm389 = vcmp.eq.f32.partialorder %v386, inf
        %v390 = vsel %vm389, %v386, %v388
        %vm391 = vcmp.eq.f32.partialorder %v386, 0.0
        %v392 = vand.u32 %v386, 2147483648
        %v393 = vsel %vm391, %v392, %v390
        %v394 = vadd.f32 %v393, 1e-06
        %v395 = vrcp.pop %v394
        %v396 = vld [vmem:[%s5] sm:$0x1]
        %v397 = vmul.f32 %v381, %v395
        %v399 = vlaneseq
        %v400 = vshrl.u32 %v399, 7
        %v401 = vsub.s32 0, %v400
        %v402 = vrot.slane %v396, %v401
        %v404 = vmul.f32 %v402, %v397
        %v405 = vld [vmem:[%s6] sm:$0x1]
        %v407 = vlaneseq
        %v408 = vshrl.u32 %v407, 7
        %v409 = vsub.s32 0, %v408
        %v410 = vrot.slane %v405, %v409
        %v412 = vadd.f32 %v404, %v410
        %413 = vst.msk [vmem:[%s258] sm:$0xff] %vm375, %v412
        %s414 = sand.u32 %s166, 1
        %s415 = scalar_lea.sflag [#allocation7], %s414
        %s416 = sand.u32 %s166, 1
        %s417 = smul.addr %s416, 8
        %s418 = scalar_lea.vmem [#allocation6], %s417
        // Predicated region
        $region85: #{tpu_custom_call.1} parent=39 // pred_check
          %p419 = pneg %p176
        $region86: #{tpu_custom_call.1} parent=39 // pred_check_branch
          %421 = sbr.rel (%p419) target = $region88
        $region87: #{tpu_custom_call.1} parent=39 // pred_region
          %s423 = ssub.s32 128, 128
          %424 = vsyncadd %s415, %s423
          %s425 = sadd.s32 %s32, %s31
          %s426 = smul.addr %s425, 128
          %s427 = scalar_lea.hbm %s7, %s426
          %s429 = sshll.u32 %s418, 4
          %s430 = int_to_ptr.vmem [resolvable:$true] %s429
          %432 = dma.vmem_to_hbm [thread:$0]  %s430, 128, %s427, %s415
        $region88: #{tpu_custom_call.1} parent=39 // pred_fallthru
          _
      $region40: #{tpu_custom_call.1} parent=5 // pred_fallthru
        _
      %p433 = scmp.le.s32.totalorder 2, %s22
      // Predicated region
      $region89: #{tpu_custom_call.1} parent=5 // pred_check
        %p434 = pneg %p433
      $region90: #{tpu_custom_call.1} parent=5 // pred_check_branch
        %436 = sbr.rel (%p434) target = $region92
      $region91: #{tpu_custom_call.1} parent=5 // pred_region
        %s437 = ssub.s32 %s22, 2
        // Predicated region
        $region93: #{tpu_custom_call.1} parent=91 // pred_check
          %p438 = pneg %p182
        $region94: #{tpu_custom_call.1} parent=91 // pred_check_branch
          %440 = sbr.rel (%p438) target = $region96
        $region95: #{tpu_custom_call.1} parent=91 // pred_region
          %s441 = sand.u32 %s167, 1
          %s442 = scalar_lea.sflag [#allocation7], %s441
          %s443 = sand.u32 %s167, 1
          %s444 = smul.addr %s443, 8
          %s445 = scalar_lea.vmem [#allocation6], %s444
          %446 = dma.done %s442, 128
        $region96: #{tpu_custom_call.1} parent=91 // pred_fallthru
          _
      $region92: #{tpu_custom_call.1} parent=5 // pred_fallthru
        _
    $region6: #{tpu_custom_call.1} parent=1 // loop_footer
      %s26 = sadd.s32 1, %s22
    $region7: #{tpu_custom_call.1} parent=1 // loop_footer_branch
      %21 = sbr.rel target = $region3
    $region8: #{tpu_custom_call.1} parent=1 // loop_exit
      _
    %447 = vsyncpa [#allocation7], 1
    %s448 = scalar_lea.sflag [#allocation7], 1
    %449 = vsyncpa %s448, 1
  %450 = vsyncmov [#allocation3]
  %s451 = vpop.sfrf %450
  %p452 = scmp.eq.s32.totalorder %s451, 0
  %p453 = pneg %p452
  %455 = shalt.err (%p453)
  %s456 = scalar_lea.sflag [#allocation3], 1
  %457 = vsyncmov %s456
  %s458 = vpop.sfrf %457
  %p459 = scmp.eq.s32.totalorder %s458, 0
  %p460 = pneg %p459
  %462 = shalt.err (%p460)
  %s463 = scalar_lea.sflag [#allocation3], 2
  %464 = vsyncmov %s463
  %s465 = vpop.sfrf %464
  %p466 = scmp.eq.s32.totalorder %s465, 0
  %p467 = pneg %p466
  %469 = shalt.err (%p467)
  %s470 = scalar_lea.sflag [#allocation3], 3
  %471 = vsyncmov %s470
  %s472 = vpop.sfrf %471
  %p473 = scmp.eq.s32.totalorder %s472, 0
  %p474 = pneg %p473
  %476 = shalt.err (%p474)
  %s477 = scalar_lea.sflag [#allocation3], 4
  %478 = vsyncmov %s477
  %s479 = vpop.sfrf %478
  %p480 = scmp.eq.s32.totalorder %s479, 0
  %p481 = pneg %p480
  %483 = shalt.err (%p481)
  %s484 = scalar_lea.sflag [#allocation3], 5
  %485 = vsyncmov %s484
  %s486 = vpop.sfrf %485
  %p487 = scmp.eq.s32.totalorder %s486, 0
  %p488 = pneg %p487
  %490 = shalt.err (%p488)
  %s491 = scalar_lea.sflag [#allocation3], 6
  %492 = vsyncmov %s491
  %s493 = vpop.sfrf %492
  %p494 = scmp.eq.s32.totalorder %s493, 0
  %p495 = pneg %p494
  %497 = shalt.err (%p495)
  %s498 = scalar_lea.sflag [#allocation3], 7
  %499 = vsyncmov %s498
  %s500 = vpop.sfrf %499
  %p501 = scmp.eq.s32.totalorder %s500, 0
  %p502 = pneg %p501
  %504 = shalt.err (%p502)

</llo_original>
